<compile_context>
chip_gen: v7x
topology: tpu7x:2x2x1
jax: 0.10.0
libtpu: 0.0.40
codegen_flags: <defaults>
</compile_context>

<pallas_src>
import math

import jax
import jax.numpy as jnp
from jax.experimental import pallas as pl
from jax.experimental.pallas import tpu as pltpu


def _build_pe(max_len: int, d_model: int, dtype=jnp.float32) -> jnp.ndarray:
    """Replicates PositionalEncoding.extend_pe (reverse=False). Assumes even d_model."""
    position = jnp.arange(0, max_len, dtype=jnp.float32)[:, None]            # (L, 1)
    div_term = jnp.exp(
        jnp.arange(0, d_model, 2, dtype=jnp.float32)
        * -(math.log(10000.0) / d_model)
    )                                                                         # (D/2,)
    angles = position * div_term                                              # (L, D/2)
    pe = jnp.zeros((max_len, d_model), dtype=jnp.float32)
    pe = pe.at[:, 0::2].set(jnp.sin(angles))
    pe = pe.at[:, 1::2].set(jnp.cos(angles))
    return pe.astype(dtype)                                                   # (L, D)


def _scaled_pe_kernel(alpha_ref, x_ref, pe_ref, o_ref):
    # alpha_ref: SMEM (1,) f32 scalar
    # x_ref, pe_ref, o_ref: (tT, D) VMEM tiles (batch dim squeezed out of x/o)
    alpha = alpha_ref[0]
    x = x_ref[...].astype(jnp.float32)
    pe = pe_ref[...].astype(jnp.float32)
    o_ref[...] = (x + alpha * pe).astype(o_ref.dtype)


def _choose_time_tile(T: int, D: int, itemsize: int) -> int:
    """Pick the time-tile so 3 arrays x 2 buffers of (tT, D) fit ~12 MiB of VMEM.

    12 MiB leaves headroom under the smallest default scoped-VMEM limit (16 MiB
    on v5e); v6e/v7x defaults (32 MiB) are strictly larger, so the same choice is
    safe on every generation without raising vmem_limit_bytes.
    """
    budget = 12 * 1024 * 1024
    max_rows = max(8, budget // (6 * D * itemsize))
    tile = min(T, 512, max_rows)
    if tile != T:
        # keep the sublane (second-minor) dim a multiple of 8 for sub-full blocks
        tile = max(8, (tile // 8) * 8)
    return tile


def scaled_positional_encoding(x: jnp.ndarray,
                               pe: jnp.ndarray,
                               alpha: jnp.ndarray,
                               *,
                               time_tile: int | None = None) -> jnp.ndarray:
    """out = x + alpha * pe[:T]   with x: (B, T, D), pe: (max_len, D), alpha: scalar."""
    B, T, D = x.shape
    # Lane-dense output is a hard assumption: D must map onto full 128-wide lanes.
    assert D % 128 == 0, f"d_model ({D}) must be a multiple of 128 for lane-dense stores"
    assert pe.shape[0] >= T, "pe table shorter than sequence"

    pe_slice = pe[:T, :].astype(x.dtype)                   # match x's HBM byte width
    alpha_arr = jnp.reshape(alpha.astype(jnp.float32), (1,))   # keep learnable scale f32

    itemsize = jnp.dtype(x.dtype).itemsize
    if time_tile is None:
        time_tile = _choose_time_tile(T, D, itemsize)
    n_time_tiles = pl.cdiv(T, time_tile)

    return pl.pallas_call(
        _scaled_pe_kernel,
        out_shape=jax.ShapeDtypeStruct((B, T, D), x.dtype),
        # Batch innermost: pe's block index is constant across the inner loop, so
        # its tile is fetched once per time-tile instead of once per (t, b) step.
        grid=(n_time_tiles, B),
        in_specs=[
            pl.BlockSpec(memory_space=pltpu.SMEM),                       # alpha (f32)
            pl.BlockSpec((None, time_tile, D), lambda t, b: (b, t, 0)),  # x (batch squeezed)
            pl.BlockSpec((time_tile, D), lambda t, b: (t, 0)),           # pe (shared over batch)
        ],
        out_specs=pl.BlockSpec((None, time_tile, D), lambda t, b: (b, t, 0)),
        compiler_params=pltpu.CompilerParams(
            # Both axes are independent -> megacore (v7x 2x TC) can shard either.
            dimension_semantics=("parallel", "parallel"),
        ),
    )(alpha_arr, x, pe_slice)


if __name__ == "__main__":
    # Small but layout-realistic shapes: (batch, time, d_model) with d_model a
    # multiple of 128 (real conformer d_model is 256/512).
    B, T, D = 2, 64, 256
    MAX_LEN = 128

    key = jax.random.PRNGKey(0)
    x = jax.random.normal(key, (B, T, D), dtype=jnp.float32)

    # Deterministic "parameters": alpha = 1.0 (as in __init__), pe from sin/cos table.
    alpha = jnp.asarray(1.0, dtype=jnp.float32)
    pe = _build_pe(MAX_LEN, D, dtype=jnp.float32)

    out = scaled_positional_encoding(x, pe, alpha)
    out = jax.block_until_ready(out)

    # Pure-JAX reference check (dropout is identity in eval).
    ref = x + alpha * pe[None, :T, :]
    assert out.shape == ref.shape
    assert jnp.allclose(out, ref, atol=1e-6, rtol=1e-6), "mismatch vs reference"

    print("KERNEL_OK")
</pallas_src>

<mosaic_0001>
module attributes {stable_mosaic.version = 11 : i64} {
  func.func @_scaled_pe_kernel(%arg0: i32, %arg1: i32, %arg2: memref<1xf32, #tpu.memory_space<smem>>, %arg3: memref<1x64x256xf32, #tpu.memory_space<vmem>>, %arg4: memref<64x256xf32, #tpu.memory_space<vmem>>, %arg5: memref<1x64x256xf32, #tpu.memory_space<vmem>>) attributes {dimension_semantics = [#tpu.dimension_semantics<parallel>, #tpu.dimension_semantics<parallel>], iteration_bounds = array<i64: 1, 2>, scalar_prefetch = 0 : i64, scratch_operands = 0 : i64, tpu.core_type = #tpu.core_type<tc>, window_params = [{transform_indices = @transform_0, window_bounds = array<i64: 1>}, {transform_indices = @transform_1, window_bounds = array<i64: 1, 64, 256>}, {transform_indices = @transform_2, window_bounds = array<i64: 64, 256>}, {transform_indices = @transform_3, window_bounds = array<i64: 1, 64, 256>}]} {
    %c0 = arith.constant 0 : index
    %0 = memref.load %arg2[%c0] : memref<1xf32, #tpu.memory_space<smem>>
    %c0_0 = arith.constant 0 : index
    %c0_1 = arith.constant 0 : index
    %c0_2 = arith.constant 0 : index
    %1 = vector.load %arg3[%c0_0, %c0_1, %c0_2] : memref<1x64x256xf32, #tpu.memory_space<vmem>>, vector<1x64x256xf32>
    %2 = vector.shape_cast %1 : vector<1x64x256xf32> to vector<64x256xf32>
    %c0_3 = arith.constant 0 : index
    %c0_4 = arith.constant 0 : index
    %3 = vector.load %arg4[%c0_3, %c0_4] : memref<64x256xf32, #tpu.memory_space<vmem>>, vector<64x256xf32>
    %4 = vector.broadcast %0 : f32 to vector<64x256xf32>
    %5 = arith.mulf %4, %3 : vector<64x256xf32>
    %6 = arith.addf %2, %5 : vector<64x256xf32>
    %c0_5 = arith.constant 0 : index
    %c0_6 = arith.constant 0 : index
    %c0_7 = arith.constant 0 : index
    %7 = vector.load %arg5[%c0_5, %c0_6, %c0_7] : memref<1x64x256xf32, #tpu.memory_space<vmem>>, vector<1x64x256xf32>
    %8 = vector.shape_cast %7 : vector<1x64x256xf32> to vector<64x256xf32>
    %9 = vector.shape_cast %6 : vector<64x256xf32> to vector<1x64x256xf32>
    tpu.vector_store %arg5[%c0_5, %c0_6, %c0_7], %9 {strides = array<i32>} : memref<1x64x256xf32, #tpu.memory_space<vmem>>, vector<1x64x256xf32>,
    return
  }
  func.func @transform_0(%arg0: i32, %arg1: i32) -> i32 {
    %c0_i32 = arith.constant 0 : i32
    %c0_i32_0 = arith.constant 0 : i32
    return %c0_i32 : i32
  }
  func.func @transform_1(%arg0: i32, %arg1: i32) -> (i32, i32, i32) {
    %c0_i32 = arith.constant 0 : i32
    %c0_i32_0 = arith.constant 0 : i32
    return %arg1, %arg0, %c0_i32 : i32, i32, i32
  }
  func.func @transform_2(%arg0: i32, %arg1: i32) -> (i32, i32) {
    %c0_i32 = arith.constant 0 : i32
    %c0_i32_0 = arith.constant 0 : i32
    return %arg0, %c0_i32 : i32, i32
  }
  func.func @transform_3(%arg0: i32, %arg1: i32) -> (i32, i32, i32) {
    %c0_i32 = arith.constant 0 : i32
    %c0_i32_0 = arith.constant 0 : i32
    return %arg1, %arg0, %c0_i32 : i32, i32, i32
  }
}

</mosaic_0001>

<llo_original>
// kernel: tpu_custom_call.1
$region0: #{tpu_custom_call.1}
  #allocation0 [shape = 'u32[]', space=smem, size = 0x4, offset = 0x4, fixed_abs, tag = 'smem constant byte address 0x4 - core index']
  #allocation1 [shape = 'u32[144,128]{1,0:T(1,128)}', space=vmem, size = 0x12000, scoped, tag = 'internal scratch']
  #allocation2 [shape = 'f32[1]{0:T(128)S(6)}', space=smem, size = 0x200, scoped, tag = 'scoped memory for tpu_custom_call.1']
  %s0 = inlined_call_operand.<no memory space> [shape: f32[1], index: 0, kind: input, shape index: {}]
  %s1 = inlined_call_operand.hbm [shape: f32[2,64,256], index: 1, kind: input, shape index: {}]
  %s2 = inlined_call_operand.hbm [shape: f32[64,256], index: 2, kind: input, shape index: {}]
  %s3 = inlined_call_operand.hbm [shape: f32[2,64,256], index: 3, kind: output, shape index: {}]
  %s4 = sld [smem:[#allocation0]]
  $region53: #{tpu_custom_call.1} parent=0
    _
  %s6 = ssub.s32 1, %s4
  %s7 = scalar_select 0, %s6, %s4
  %8 = sst [smem:[#allocation2]] %s0
  $region1: #{tpu_custom_call.1} parent=0
    #allocation3 [shape = 'u8[131072]{0}', space=vmem, size = 0x20000, scoped, tag = 'input window, operand 1']
    #allocation4 [shape = 's32[2]{0}', space=sflag, size = 0x8, scoped, tag = 'scoped memory for tpu_custom_call.1']
    #allocation5 [shape = 's32[2]{0}', space=sflag, size = 0x8, scoped, tag = 'scoped memory for tpu_custom_call.1']
    #allocation6 [shape = 'u8[65536]{0}', space=vmem, size = 0x10000, scoped, tag = 'input window, operand 2, single buffered']
    #allocation7 [shape = 's32[1]{0}', space=sflag, size = 0x4, scoped, tag = 'scoped memory for tpu_custom_call.1']
    #allocation8 [shape = 'u8[131072]{0}', space=vmem, size = 0x20000, scoped, tag = 'output window, operand 0']
    %9 = vsyncpa [#allocation4], 0
    %s10 = scalar_lea.sflag [#allocation4], 1
    %11 = vsyncpa %s10, 0
    %12 = vsyncpa [#allocation7], 0
    %13 = vsyncpa [#allocation5], 0
    %s14 = scalar_lea.sflag [#allocation5], 1
    %15 = vsyncpa %s14, 0
    loop: start=0, step=1, limit=4
    $region2: #{tpu_custom_call.1} parent=1 // loop_pre_header
      _
    $region3: #{tpu_custom_call.1} parent=1 // loop_header
      %s17 = sphi 0, %s21
      %p18 = scmp.ge.s32.totalorder %s17, 4
      %s24 = sphi 0, %s36
      %s25 = sphi 0, %s32
      %s26 = sphi 0, %s24
      %s27 = sphi 0, %s25
      %s28 = sphi 0, %s26
      %s29 = sphi 0, %s27
      %s37 = sphi 0, %s37
      %s39 = sphi 0, %s37
      %s40 = sphi 0, %s39
      %s54 = sphi 0, %s40
      %s62 = sphi 0, %s64
      %s65 = sphi 0, %s62
      %s66 = sphi 0, %s65
      %s82 = sphi 0, %s66
      %s88 = sphi 0, %s90
      %s91 = sphi 0, %s88
      %s92 = sphi 0, %s91
      %s108 = sphi 0, %s92
      %s116 = sphi 0, %s118
      %s119 = sphi 0, %s116
      %s120 = sphi 0, %s119
      %s136 = sphi 0, %s120
    $region4: #{tpu_custom_call.1} parent=1 // loop_header_branch
      %20 = sbr.rel (%p18) target = $region8
    $region5: #{tpu_custom_call.1} parent=1 // loop_body
      %s22 = ssub.s32 %s17, 1
      %s23 = ssub.s32 %s17, 2
      %s30 = sadd.s32 1, %s25
      %p31 = scmp.ge.s32.totalorder %s30, 2
      %s32 = scalar_select %p31, 0, %s30
      %s33 = sadd.s32 1, %s24
      %s34 = scalar_select %p31, %s33, %s24
      %p35 = scmp.ge.s32.totalorder %s34, 1
      %s36 = scalar_select %p35, 0, %s34
      %s38 = sadd.s32 %s37, 1
      %p41 = scmp.eq.s32.totalorder %s17, 1
      %p42 = scmp.ne.s32.totalorder %s37, %s39
      %p43 = scmp.eq.s32.totalorder %s17, 0
      %p44 = por %p42, %p43
      %p45 = scmp.ne.s32.totalorder %s37, %s39
      %p46 = scmp.eq.s32.totalorder %s22, 1
      %p47 = por %p45, %p46
      %p48 = scmp.ne.s32.totalorder %s39, %s40
      %p49 = scmp.eq.s32.totalorder %s22, 0
      %p50 = por %p48, %p49
      %p51 = scmp.ne.s32.totalorder %s39, %s40
      %p52 = scmp.eq.s32.totalorder %s23, 1
      %p53 = por %p51, %p52
      %p55 = scmp.ne.s32.totalorder %s40, %s54
      %p56 = scmp.eq.s32.totalorder %s23, 0
      %p57 = por %p55, %p56
      %s58 = ssub.s32 %s25, %s32
      %s59 = ssub.s32 %s24, %s36
      %s60 = sor.u32 %s58, %s59
      %p61 = scmp.eq.s32.totalorder %s60, 0
      %s63 = sadd.s32 %s62, 1
      %s64 = scalar_select %p61, %s62, %s63
      %p67 = pneg %p61
      %p68 = scmp.eq.s32.totalorder %s17, 1
      %p69 = por %p67, %p68
      %p70 = scmp.ne.s32.totalorder %s62, %s65
      %p71 = scmp.eq.s32.totalorder %s17, 0
      %p72 = por %p70, %p71
      %p73 = scmp.ne.s32.totalorder %s62, %s65
      %p74 = scmp.eq.s32.totalorder %s22, 1
      %p75 = por %p73, %p74
      %p76 = scmp.ne.s32.totalorder %s65, %s66
      %p77 = scmp.eq.s32.totalorder %s22, 0
      %p78 = por %p76, %p77
      %p79 = scmp.ne.s32.totalorder %s65, %s66
      %p80 = scmp.eq.s32.totalorder %s23, 1
      %p81 = por %p79, %p80
      %p83 = scmp.ne.s32.totalorder %s66, %s82
      %p84 = scmp.eq.s32.totalorder %s23, 0
      %p85 = por %p83, %p84
      %s86 = ssub.s32 %s24, %s36
      %p87 = scmp.eq.s32.totalorder %s86, 0
      %s89 = sadd.s32 %s88, 1
      %s90 = scalar_select %p87, %s88, %s89
      %p93 = pneg %p87
      %p94 = scmp.eq.s32.totalorder %s17, 1
      %p95 = por %p93, %p94
      %p96 = scmp.ne.s32.totalorder %s88, %s91
      %p97 = scmp.eq.s32.totalorder %s17, 0
      %p98 = por %p96, %p97
      %p99 = scmp.ne.s32.totalorder %s88, %s91
      %p100 = scmp.eq.s32.totalorder %s22, 1
      %p101 = por %p99, %p100
      %p102 = scmp.ne.s32.totalorder %s91, %s92
      %p103 = scmp.eq.s32.totalorder %s22, 0
      %p104 = por %p102, %p103
      %p105 = scmp.ne.s32.totalorder %s91, %s92
      %p106 = scmp.eq.s32.totalorder %s23, 1
      %p107 = por %p105, %p106
      %p109 = scmp.ne.s32.totalorder %s92, %s108
      %p110 = scmp.eq.s32.totalorder %s23, 0
      %p111 = por %p109, %p110
      %s112 = ssub.s32 %s25, %s32
      %s113 = ssub.s32 %s24, %s36
      %s114 = sor.u32 %s112, %s113
      %p115 = scmp.eq.s32.totalorder %s114, 0
      %s117 = sadd.s32 %s116, 1
      %s118 = scalar_select %p115, %s116, %s117
      %p121 = pneg %p115
      %p122 = scmp.eq.s32.totalorder %s17, 1
      %p123 = por %p121, %p122
      %p124 = scmp.ne.s32.totalorder %s116, %s119
      %p125 = scmp.eq.s32.totalorder %s17, 0
      %p126 = por %p124, %p125
      %p127 = scmp.ne.s32.totalorder %s116, %s119
      %p128 = scmp.eq.s32.totalorder %s22, 1
      %p129 = por %p127, %p128
      %p130 = scmp.ne.s32.totalorder %s119, %s120
      %p131 = scmp.eq.s32.totalorder %s22, 0
      %p132 = por %p130, %p131
      %p133 = scmp.ne.s32.totalorder %s119, %s120
      %p134 = scmp.eq.s32.totalorder %s23, 1
      %p135 = por %p133, %p134
      %p137 = scmp.ne.s32.totalorder %s120, %s136
      %p138 = scmp.eq.s32.totalorder %s23, 0
      %p139 = por %p137, %p138
      %p140 = scmp.le.s32.totalorder 1, %s17
      %p141 = scmp.lt.s32.totalorder %s17, 3
      %p142 = pnand %p140, %p141
      %p143 = pneg %p142
      // Predicated region
      $region9: #{tpu_custom_call.1} parent=5 // pred_check
        _
      $region10: #{tpu_custom_call.1} parent=5 // pred_check_branch
        %145 = sbr.rel (%p142) target = $region12
      $region11: #{tpu_custom_call.1} parent=5 // pred_region
        %s146 = ssub.s32 %s17, 1
        // Predicated region
        $region13: #{tpu_custom_call.1} parent=11 // pred_check
          %p147 = pneg %p50
        $region14: #{tpu_custom_call.1} parent=11 // pred_check_branch
          %149 = sbr.rel (%p147) target = $region16
        $region15: #{tpu_custom_call.1} parent=11 // pred_region
          _
        $region16: #{tpu_custom_call.1} parent=11 // pred_fallthru
          _
        // Predicated region
        $region17: #{tpu_custom_call.1} parent=11 // pred_check
          %p150 = pneg %p104
        $region18: #{tpu_custom_call.1} parent=11 // pred_check_branch
          %152 = sbr.rel (%p150) target = $region20
        $region19: #{tpu_custom_call.1} parent=11 // pred_region
          %s153 = smul.u32 8, %s26
          %s155 = ssub.s32 2048, 2048
          %156 = vsyncadd [#allocation7], %s155
          %s157 = smul.addr %s153, 2
          %s158 = smul.addr %s157, 128
          %s159 = scalar_lea.hbm %s2, %s158
          %s160 = sshll.u32 [#allocation6], 4
          %s161 = int_to_ptr.vmem [resolvable:$true] %s160
          %166 = dma.hbm_to_vmem [thread:$0]  %s159, 2048, %s161, [#allocation7], 256, 256, 16
        $region20: #{tpu_custom_call.1} parent=11 // pred_fallthru
          _
      $region12: #{tpu_custom_call.1} parent=5 // pred_fallthru
        _
      %p167 = scmp.lt.s32.totalorder %s17, 2
      // Predicated region
      $region21: #{tpu_custom_call.1} parent=5 // pred_check
        %p168 = pneg %p167
      $region22: #{tpu_custom_call.1} parent=5 // pred_check_branch
        %170 = sbr.rel (%p168) target = $region24
      $region23: #{tpu_custom_call.1} parent=5 // pred_region
        // Predicated region
        $region25: #{tpu_custom_call.1} parent=23 // pred_check
          %p171 = pneg %p72
        $region26: #{tpu_custom_call.1} parent=23 // pred_check_branch
          %173 = sbr.rel (%p171) target = $region28
        $region27: #{tpu_custom_call.1} parent=23 // pred_region
          %s174 = sand.u32 %s62, 1
          %s175 = scalar_lea.sflag [#allocation4], %s174
          %s176 = sand.u32 %s62, 1
          %s177 = smul.addr %s176, 128
          %s178 = scalar_lea.vmem [#allocation3], %s177
          %s179 = smul.u32 8, %s24
          %s181 = ssub.s32 2048, 2048
          %182 = vsyncadd %s175, %s181
          %s183 = smul.addr %s179, 2
          %s184 = smul.addr %s25, 16
          %s185 = sadd.s32 %s183, %s184
          %s186 = smul.addr %s185, 128
          %s187 = scalar_lea.hbm %s1, %s186
          %s188 = sshll.u32 %s178, 4
          %s189 = int_to_ptr.vmem [resolvable:$true] %s188
          %194 = dma.hbm_to_vmem [thread:$0]  %s187, 2048, %s189, %s175, 256, 256, 16
        $region28: #{tpu_custom_call.1} parent=23 // pred_fallthru
          _
      $region24: #{tpu_custom_call.1} parent=5 // pred_fallthru
        _
      %p195 = scmp.le.s32.totalorder 1, %s17
      %p196 = scmp.lt.s32.totalorder %s17, 3
      %p197 = pnand %p195, %p196
      %p198 = pneg %p197
      // Predicated region
      $region29: #{tpu_custom_call.1} parent=5 // pred_check
        _
      $region30: #{tpu_custom_call.1} parent=5 // pred_check_branch
        %200 = sbr.rel (%p197) target = $region32
      $region31: #{tpu_custom_call.1} parent=5 // pred_region
        %s201 = ssub.s32 %s17, 1
        %s202 = sand.u32 %s65, 1
        %s203 = scalar_lea.sflag [#allocation4], %s202
        %s204 = sand.u32 %s65, 1
        %s205 = smul.addr %s204, 128
        %s206 = scalar_lea.vmem [#allocation3], %s205
        // Predicated region
        $region33: #{tpu_custom_call.1} parent=31 // pred_check
          %p207 = pneg %p78
        $region34: #{tpu_custom_call.1} parent=31 // pred_check_branch
          %209 = sbr.rel (%p207) target = $region36
        $region35: #{tpu_custom_call.1} parent=31 // pred_region
          %210 = dma.done %s203, 2048
        $region36: #{tpu_custom_call.1} parent=31 // pred_fallthru
          _
        // Predicated region
        $region37: #{tpu_custom_call.1} parent=31 // pred_check
          %p211 = pneg %p104
        $region38: #{tpu_custom_call.1} parent=31 // pred_check_branch
          %213 = sbr.rel (%p211) target = $region40
        $region39: #{tpu_custom_call.1} parent=31 // pred_region
          %214 = dma.done [#allocation7], 2048
        $region40: #{tpu_custom_call.1} parent=31 // pred_fallthru
          _
        %p215 = pneg %p50
        %p216 = pneg %p47
        %s217 = sand.u32 %s65, 1
        %s218 = scalar_lea.sflag [#allocation4], %s217
        %s219 = sand.u32 %s65, 1
        %s220 = smul.addr %s219, 128
        %s221 = scalar_lea.vmem [#allocation3], %s220
        %p222 = pneg %p78
        %p223 = pneg %p75
        %p224 = pneg %p104
        %p225 = pneg %p101
        %p226 = pneg %p132
        %p227 = pneg %p129
        %s228 = sand.u32 %s119, 1
        %s229 = scalar_lea.sflag [#allocation5], %s228
        %s230 = sand.u32 %s119, 1
        %s231 = smul.addr %s230, 128
        %s232 = scalar_lea.vmem [#allocation8], %s231
        %s233 = smul.u32 8, %s26
        %s234 = smul.u32 8, %s26
        %s235 = smul.u32 8, %s26
        %s236 = sld [smem:[#allocation2]]
        %v237 = vld [vmem:[%s206] sm:$0xff]
        %v238 = vld [vmem:[%s206 + $0x8] sm:$0xff]
        %v239 = vld [vmem:[%s206 + $0x10] sm:$0xff]
        %v240 = vld [vmem:[%s206 + $0x18] sm:$0xff]
        %v241 = vld [vmem:[%s206 + $0x20] sm:$0xff]
        %v242 = vld [vmem:[%s206 + $0x28] sm:$0xff]
        %v243 = vld [vmem:[%s206 + $0x30] sm:$0xff]
        %v244 = vld [vmem:[%s206 + $0x38] sm:$0xff]
        %v245 = vld [vmem:[%s206 + $0x40] sm:$0xff]
        %v246 = vld [vmem:[%s206 + $0x48] sm:$0xff]
        %v247 = vld [vmem:[%s206 + $0x50] sm:$0xff]
        %v248 = vld [vmem:[%s206 + $0x58] sm:$0xff]
        %v249 = vld [vmem:[%s206 + $0x60] sm:$0xff]
        %v250 = vld [vmem:[%s206 + $0x68] sm:$0xff]
        %v251 = vld [vmem:[%s206 + $0x70] sm:$0xff]
        %v252 = vld [vmem:[%s206 + $0x78] sm:$0xff]
        %v253 = vld [vmem:[#allocation6] sm:$0xff]
        %v254 = vld [vmem:[#allocation6 + $0x8] sm:$0xff]
        %v255 = vld [vmem:[#allocation6 + $0x10] sm:$0xff]
        %v256 = vld [vmem:[#allocation6 + $0x18] sm:$0xff]
        %v257 = vld [vmem:[#allocation6 + $0x20] sm:$0xff]
        %v258 = vld [vmem:[#allocation6 + $0x28] sm:$0xff]
        %v259 = vld [vmem:[#allocation6 + $0x30] sm:$0xff]
        %v260 = vld [vmem:[#allocation6 + $0x38] sm:$0xff]
        %v261 = vld [vmem:[#allocation6 + $0x40] sm:$0xff]
        %v262 = vld [vmem:[#allocation6 + $0x48] sm:$0xff]
        %v263 = vld [vmem:[#allocation6 + $0x50] sm:$0xff]
        %v264 = vld [vmem:[#allocation6 + $0x58] sm:$0xff]
        %v265 = vld [vmem:[#allocation6 + $0x60] sm:$0xff]
        %v266 = vld [vmem:[#allocation6 + $0x68] sm:$0xff]
        %v267 = vld [vmem:[#allocation6 + $0x70] sm:$0xff]
        %v268 = vld [vmem:[#allocation6 + $0x78] sm:$0xff]
        %v269 = vstv %s236
        %v270 = vmul.f32 %v269, %v253
        %v271 = vmul.f32 %v269, %v254
        %v272 = vmul.f32 %v269, %v255
        %v273 = vmul.f32 %v269, %v256
        %v274 = vmul.f32 %v269, %v257
        %v275 = vmul.f32 %v269, %v258
        %v276 = vmul.f32 %v269, %v259
        %v277 = vmul.f32 %v269, %v260
        %v278 = vmul.f32 %v269, %v261
        %v279 = vmul.f32 %v269, %v262
        %v280 = vmul.f32 %v269, %v263
        %v281 = vmul.f32 %v269, %v264
        %v282 = vmul.f32 %v269, %v265
        %v283 = vmul.f32 %v269, %v266
        %v284 = vmul.f32 %v269, %v267
        %v285 = vmul.f32 %v269, %v268
        %v286 = vadd.f32 %v237, %v270
        %v287 = vadd.f32 %v238, %v271
        %v288 = vadd.f32 %v239, %v272
        %v289 = vadd.f32 %v240, %v273
        %v290 = vadd.f32 %v241, %v274
        %v291 = vadd.f32 %v242, %v275
        %v292 = vadd.f32 %v243, %v276
        %v293 = vadd.f32 %v244, %v277
        %v294 = vadd.f32 %v245, %v278
        %v295 = vadd.f32 %v246, %v279
        %v296 = vadd.f32 %v247, %v280
        %v297 = vadd.f32 %v248, %v281
        %v298 = vadd.f32 %v249, %v282
        %v299 = vadd.f32 %v250, %v283
        %v300 = vadd.f32 %v251, %v284
        %v301 = vadd.f32 %v252, %v285
        %302 = vst [vmem:[%s232] sm:$0xff] %v286
        %303 = vst [vmem:[%s232 + $0x8] sm:$0xff] %v287
        %304 = vst [vmem:[%s232 + $0x10] sm:$0xff] %v288
        %305 = vst [vmem:[%s232 + $0x18] sm:$0xff] %v289
        %306 = vst [vmem:[%s232 + $0x20] sm:$0xff] %v290
        %307 = vst [vmem:[%s232 + $0x28] sm:$0xff] %v291
        %308 = vst [vmem:[%s232 + $0x30] sm:$0xff] %v292
        %309 = vst [vmem:[%s232 + $0x38] sm:$0xff] %v293
        %310 = vst [vmem:[%s232 + $0x40] sm:$0xff] %v294
        %311 = vst [vmem:[%s232 + $0x48] sm:$0xff] %v295
        %312 = vst [vmem:[%s232 + $0x50] sm:$0xff] %v296
        %313 = vst [vmem:[%s232 + $0x58] sm:$0xff] %v297
        %314 = vst [vmem:[%s232 + $0x60] sm:$0xff] %v298
        %315 = vst [vmem:[%s232 + $0x68] sm:$0xff] %v299
        %316 = vst [vmem:[%s232 + $0x70] sm:$0xff] %v300
        %317 = vst [vmem:[%s232 + $0x78] sm:$0xff] %v301
        %s318 = sand.u32 %s119, 1
        %s319 = scalar_lea.sflag [#allocation5], %s318
        %s320 = sand.u32 %s119, 1
        %s321 = smul.addr %s320, 128
        %s322 = scalar_lea.vmem [#allocation8], %s321
        // Predicated region
        $region41: #{tpu_custom_call.1} parent=31 // pred_check
          %p323 = pneg %p129
        $region42: #{tpu_custom_call.1} parent=31 // pred_check_branch
          %325 = sbr.rel (%p323) target = $region44
        $region43: #{tpu_custom_call.1} parent=31 // pred_region
          %s326 = smul.u32 8, %s26
          %s328 = ssub.s32 2048, 2048
          %329 = vsyncadd %s319, %s328
          %s330 = smul.addr %s326, 2
          %s331 = smul.addr %s27, 16
          %s332 = sadd.s32 %s330, %s331
          %s333 = smul.addr %s332, 128
          %s334 = scalar_lea.hbm %s3, %s333
          %s335 = sshll.u32 %s322, 4
          %s336 = int_to_ptr.vmem [resolvable:$true] %s335
          %341 = dma.vmem_to_hbm [thread:$0]  %s336, 2048, %s334, %s319, 256, 256, 16
        $region44: #{tpu_custom_call.1} parent=31 // pred_fallthru
          _
      $region32: #{tpu_custom_call.1} parent=5 // pred_fallthru
        _
      %p342 = scmp.le.s32.totalorder 2, %s17
      // Predicated region
      $region45: #{tpu_custom_call.1} parent=5 // pred_check
        %p343 = pneg %p342
      $region46: #{tpu_custom_call.1} parent=5 // pred_check_branch
        %345 = sbr.rel (%p343) target = $region48
      $region47: #{tpu_custom_call.1} parent=5 // pred_region
        %s346 = ssub.s32 %s17, 2
        // Predicated region
        $region49: #{tpu_custom_call.1} parent=47 // pred_check
          %p347 = pneg %p135
        $region50: #{tpu_custom_call.1} parent=47 // pred_check_branch
          %349 = sbr.rel (%p347) target = $region52
        $region51: #{tpu_custom_call.1} parent=47 // pred_region
          %s350 = sand.u32 %s120, 1
          %s351 = scalar_lea.sflag [#allocation5], %s350
          %s352 = sand.u32 %s120, 1
          %s353 = smul.addr %s352, 128
          %s354 = scalar_lea.vmem [#allocation8], %s353
          %355 = dma.done %s351, 2048
        $region52: #{tpu_custom_call.1} parent=47 // pred_fallthru
          _
      $region48: #{tpu_custom_call.1} parent=5 // pred_fallthru
        _
    $region6: #{tpu_custom_call.1} parent=1 // loop_footer
      %s21 = sadd.s32 1, %s17
    $region7: #{tpu_custom_call.1} parent=1 // loop_footer_branch
      %16 = sbr.rel target = $region3
    $region8: #{tpu_custom_call.1} parent=1 // loop_exit
      _
    %356 = vsyncpa [#allocation4], 1
    %s357 = scalar_lea.sflag [#allocation4], 1
    %358 = vsyncpa %s357, 1
    %359 = vsyncpa [#allocation7], 1
    %360 = vsyncpa [#allocation5], 1
    %s361 = scalar_lea.sflag [#allocation5], 1
    %362 = vsyncpa %s361, 1

</llo_original>
